<compile_context>
chip_gen: v5e
topology: v5e:2x2
jax: 0.10.0
libtpu: 0.0.40
codegen_flags: <defaults>
</compile_context>

<pallas_src>
import jax
import jax.numpy as jnp
from jax.experimental import pallas as pl
from jax.experimental.pallas import tpu as pltpu


def _round_up(n, m):
    return ((n + m - 1) // m) * m


def _d2_kernel(x_ref, w_ref, o_ref):
    # x_ref: (TM, 2048) VMEM, w_ref: (1, 2048) VMEM lane-dense, o_ref: (TM, 1)
    x = x_ref[...].astype(jnp.float32)
    w = w_ref[...].astype(jnp.float32)          # broadcasts over sublanes
    acc = jnp.sum(x * w, axis=-1, keepdims=True)  # VPU mul + XLU lane reduce
    o_ref[...] = acc.astype(o_ref.dtype)


def d2_forward(x, weight, bias, *, tm=None):
    """x: (B, 2048); weight: (1, 2048); bias: (1,) -> (B, 1)."""
    B, K = x.shape
    assert weight.shape == (1, K)

    if tm is None:
        # 512 rows * 2048 * 4B = 4 MiB per buffer -> 8 MiB double-buffered:
        # fits default scoped VMEM on v5e (16 MiB), v6e (32 MiB), v7x (32 MiB).
        tm = 512 if B >= 512 else _round_up(B, 8)
    num_tiles = pl.cdiv(B, tm)
    b_pad = num_tiles * tm
    if b_pad != B:
        x = jnp.pad(x, ((0, b_pad - B), (0, 0)))

    out = pl.pallas_call(
        _d2_kernel,
        out_shape=jax.ShapeDtypeStruct((b_pad, 1), x.dtype),
        grid_spec=pltpu.PrefetchScalarGridSpec(
            num_scalar_prefetch=0,
            grid=(num_tiles,),
            in_specs=[
                pl.BlockSpec((tm, K), lambda i: (i, 0)),   # streamed batch tile
                pl.BlockSpec((1, K), lambda i: (0, 0)),    # weight, resident
            ],
            out_specs=pl.BlockSpec((tm, 1), lambda i: (i, 0)),
        ),
        compiler_params=pltpu.CompilerParams(
            dimension_semantics=("parallel",),   # independent tiles -> v7x 2-TC split
        ),
        cost_estimate=pl.CostEstimate(
            flops=2 * b_pad * K,
            transcendentals=0,
            bytes_accessed=b_pad * K * 4 + K * 4 + b_pad * 4,
        ),
    )(x, weight)

    out = out[:B]
    # Bias added here: XLA fuses the scalar add; avoids a padded (8,128) VMEM
    # tile and an extra 4-byte DMA per grid step inside the kernel.
    return out + bias


if __name__ == "__main__":
    key = jax.random.PRNGKey(0)
    kx, kw = jax.random.split(key)

    B, K = 8, 2048
    x = jax.random.normal(kx, (B, K), dtype=jnp.float32)

    # weights_init: Linear weight ~ N(0, 0.02), bias = 0
    weight = 0.02 * jax.random.normal(kw, (1, K), dtype=jnp.float32)
    bias = jnp.zeros((1,), dtype=jnp.float32)

    out = d2_forward(x, weight, bias)
    jax.block_until_ready(out)

    # correctness check against plain JAX reference
    ref = x @ weight.T + bias
    assert out.shape == (B, 1)
    assert jnp.allclose(out, ref, atol=1e-4, rtol=1e-4)

    print("KERNEL_OK")
</pallas_src>

<mosaic_0001>
module attributes {stable_mosaic.version = 11 : i64} {
  func.func @_d2_kernel(%arg0: i32, %arg1: memref<8x2048xf32, #tpu.memory_space<vmem>>, %arg2: memref<1x2048xf32, #tpu.memory_space<vmem>>, %arg3: memref<8x1xf32, #tpu.memory_space<vmem>>) attributes {dimension_semantics = [#tpu.dimension_semantics<parallel>], iteration_bounds = array<i64: 1>, scalar_prefetch = 0 : i64, scratch_operands = 0 : i64, tpu.core_type = #tpu.core_type<tc>, window_params = [{transform_indices = @transform_0, window_bounds = array<i64: 8, 2048>}, {pipeline_mode = #tpu.pipeline_mode<synchronous>, transform_indices = @transform_1, window_bounds = array<i64: 1, 2048>}, {transform_indices = @transform_2, window_bounds = array<i64: 8, 1>}]} {
    %c0 = arith.constant 0 : index
    %c0_0 = arith.constant 0 : index
    %0 = vector.load %arg1[%c0, %c0_0] : memref<8x2048xf32, #tpu.memory_space<vmem>>, vector<8x2048xf32>
    %c0_1 = arith.constant 0 : index
    %c0_2 = arith.constant 0 : index
    %1 = vector.load %arg2[%c0_1, %c0_2] : memref<1x2048xf32, #tpu.memory_space<vmem>>, vector<1x2048xf32>
    %2 = vector.broadcast %1 : vector<1x2048xf32> to vector<8x2048xf32>
    %3 = arith.mulf %0, %2 : vector<8x2048xf32>
    %cst = arith.constant dense<0.000000e+00> : vector<8xf32>
    %4 = vector.multi_reduction <add>, %3, %cst [1] : vector<8x2048xf32> to vector<8xf32>
    %5 = vector.shape_cast %4 : vector<8xf32> to vector<8x1xf32>
    %c0_3 = arith.constant 0 : index
    %c0_4 = arith.constant 0 : index
    %6 = vector.load %arg3[%c0_3, %c0_4] : memref<8x1xf32, #tpu.memory_space<vmem>>, vector<8x1xf32>
    tpu.vector_store %arg3[%c0_3, %c0_4], %5 {strides = array<i32>} : memref<8x1xf32, #tpu.memory_space<vmem>>, vector<8x1xf32>,
    return
  }
  func.func @transform_0(%arg0: i32) -> (i32, i32) {
    %c0_i32 = arith.constant 0 : i32
    %c0_i32_0 = arith.constant 0 : i32
    return %arg0, %c0_i32 : i32, i32
  }
  func.func @transform_1(%arg0: i32) -> (i32, i32) {
    %c0_i32 = arith.constant 0 : i32
    %c0_i32_0 = arith.constant 0 : i32
    %c0_i32_1 = arith.constant 0 : i32
    return %c0_i32, %c0_i32_0 : i32, i32
  }
  func.func @transform_2(%arg0: i32) -> (i32, i32) {
    %c0_i32 = arith.constant 0 : i32
    %c0_i32_0 = arith.constant 0 : i32
    return %arg0, %c0_i32 : i32, i32
  }
}

</mosaic_0001>

<llo_original>
// kernel: tpu_custom_call.1
$region0: #{tpu_custom_call.1}
  #allocation0 [shape = 'u32[]', space=smem, size = 0x4, offset = 0x4, fixed_abs, tag = 'smem constant byte address 0x4 - core index']
  #allocation1 [shape = 'u32[72,128]{1,0:T(1,128)}', space=vmem, size = 0x9000, scoped, tag = 'internal scratch']
  %s0 = inlined_call_operand.hbm [shape: f32[8,2048], index: 0, kind: input, shape index: {}]
  %s1 = inlined_call_operand.hbm [shape: f32[1,2048], index: 1, kind: input, shape index: {}]
  %s2 = inlined_call_operand.vmem [shape: f32[8,1], index: 2, kind: output, shape index: {}]
  %s3 = sld [smem:[#allocation0]]
  $region26: #{tpu_custom_call.1} parent=0
    _
  %s5 = ssub.s32 1, %s3
  %s6 = scalar_select 0, %s5, %s3
  $region1: #{tpu_custom_call.1} parent=0
    #allocation2 [shape = 'u8[65536]{0}', space=vmem, size = 0x10000, scoped, tag = 'input window, operand 0, single buffered']
    #allocation3 [shape = 's32[1]{0}', space=sflag, size = 0x4, scoped, tag = 'scoped memory for tpu_custom_call.1']
    #allocation4 [shape = 'u8[8192]{0}', space=vmem, size = 0x2000, scoped, tag = 'input window, operand 1, single buffered']
    #allocation5 [shape = 's32[1]{0}', space=sflag, size = 0x4, scoped, tag = 'scoped memory for tpu_custom_call.1']
    %7 = vsyncpa [#allocation3], 0
    %8 = vsyncpa [#allocation5], 0
    // Predicated region
    $region2: #{tpu_custom_call.1} parent=1 // pred_check
      _
    $region3: #{tpu_custom_call.1} parent=1 // pred_check_branch
      %10 = sbr.rel (0) target = $region5
    $region4: #{tpu_custom_call.1} parent=1 // pred_region
      %12 = vsyncadd [#allocation3], 0
      %s14 = sshll.u32 %s0, 4
      %s15 = int_to_ptr.hbm [resolvable:$true] %s14
      %s16 = sshll.u32 [#allocation2], 4
      %s17 = int_to_ptr.vmem [resolvable:$true] %s16
      %19 = dma.hbm_to_vmem [thread:$0]  %s15, 2048, %s17, [#allocation3]
    $region5: #{tpu_custom_call.1} parent=1 // pred_fallthru
      _
    // Predicated region
    $region6: #{tpu_custom_call.1} parent=1 // pred_check
      _
    $region7: #{tpu_custom_call.1} parent=1 // pred_check_branch
      %21 = sbr.rel (0) target = $region9
    $region8: #{tpu_custom_call.1} parent=1 // pred_region
      %23 = vsyncadd [#allocation5], 0
      %s25 = sshll.u32 %s1, 4
      %s26 = int_to_ptr.hbm [resolvable:$true] %s25
      %s27 = sshll.u32 [#allocation4], 4
      %s28 = int_to_ptr.vmem [resolvable:$true] %s27
      %30 = dma.hbm_to_vmem [thread:$0]  %s26, 256, %s28, [#allocation5]
    $region9: #{tpu_custom_call.1} parent=1 // pred_fallthru
      _
    // Predicated region
    $region10: #{tpu_custom_call.1} parent=1 // pred_check
      _
    $region11: #{tpu_custom_call.1} parent=1 // pred_check_branch
      %32 = sbr.rel (0) target = $region13
    $region12: #{tpu_custom_call.1} parent=1 // pred_region
      %34 = dma.done [#allocation3], 2048
    $region13: #{tpu_custom_call.1} parent=1 // pred_fallthru
      _
    // Predicated region
    $region14: #{tpu_custom_call.1} parent=1 // pred_check
      _
    $region15: #{tpu_custom_call.1} parent=1 // pred_check_branch
      %36 = sbr.rel (0) target = $region17
    $region16: #{tpu_custom_call.1} parent=1 // pred_region
      %38 = dma.done [#allocation5], 256
    $region17: #{tpu_custom_call.1} parent=1 // pred_fallthru
      _
    %v39 = vld [vmem:[#allocation2] sm:$0xff]
    %v40 = vld [vmem:[#allocation2 + $0x8] sm:$0xff]
    %v41 = vld [vmem:[#allocation2 + $0x10] sm:$0xff]
    %v42 = vld [vmem:[#allocation2 + $0x18] sm:$0xff]
    %v43 = vld [vmem:[#allocation2 + $0x20] sm:$0xff]
    %v44 = vld [vmem:[#allocation2 + $0x28] sm:$0xff]
    %v45 = vld [vmem:[#allocation2 + $0x30] sm:$0xff]
    %v46 = vld [vmem:[#allocation2 + $0x38] sm:$0xff]
    %v47 = vld [vmem:[#allocation2 + $0x40] sm:$0xff]
    %v48 = vld [vmem:[#allocation2 + $0x48] sm:$0xff]
    %v49 = vld [vmem:[#allocation2 + $0x50] sm:$0xff]
    %v50 = vld [vmem:[#allocation2 + $0x58] sm:$0xff]
    %v51 = vld [vmem:[#allocation2 + $0x60] sm:$0xff]
    %v52 = vld [vmem:[#allocation2 + $0x68] sm:$0xff]
    %v53 = vld [vmem:[#allocation2 + $0x70] sm:$0xff]
    %v54 = vld [vmem:[#allocation2 + $0x78] sm:$0xff]
    %v55 = vld [vmem:[#allocation4] sm:$0xff]
    %v56 = vld [vmem:[#allocation4 + $0x8] sm:$0xff]
    %v59 = vperm.slane %v55, 0
    %v60 = vperm.slane %v55, 1
    %v61 = vperm.slane %v55, 2
    %v62 = vperm.slane %v55, 3
    %v63 = vperm.slane %v55, 4
    %v64 = vperm.slane %v55, 5
    %v65 = vperm.slane %v55, 6
    %v66 = vperm.slane %v55, 7
    %v67 = vperm.slane %v56, 0
    %v68 = vperm.slane %v56, 1
    %v69 = vperm.slane %v56, 2
    %v70 = vperm.slane %v56, 3
    %v71 = vperm.slane %v56, 4
    %v72 = vperm.slane %v56, 5
    %v73 = vperm.slane %v56, 6
    %v74 = vperm.slane %v56, 7
    %v91 = vmul.f32 %v39, %v59
    %v92 = vmul.f32 %v40, %v60
    %v93 = vmul.f32 %v41, %v61
    %v94 = vmul.f32 %v42, %v62
    %v95 = vmul.f32 %v43, %v63
    %v96 = vmul.f32 %v44, %v64
    %v97 = vmul.f32 %v45, %v65
    %v98 = vmul.f32 %v46, %v66
    %v99 = vmul.f32 %v47, %v67
    %v100 = vmul.f32 %v48, %v68
    %v101 = vmul.f32 %v49, %v69
    %v102 = vmul.f32 %v50, %v70
    %v103 = vmul.f32 %v51, %v71
    %v104 = vmul.f32 %v52, %v72
    %v105 = vmul.f32 %v53, %v73
    %v106 = vmul.f32 %v54, %v74
    %v107 = vadd.f32 %v91, %v92
    %v108 = vadd.f32 %v107, %v93
    %v109 = vadd.f32 %v108, %v94
    %v110 = vadd.f32 %v109, %v95
    %v111 = vadd.f32 %v110, %v96
    %v112 = vadd.f32 %v111, %v97
    %v113 = vadd.f32 %v112, %v98
    %v114 = vadd.f32 %v113, %v99
    %v115 = vadd.f32 %v114, %v100
    %v116 = vadd.f32 %v115, %v101
    %v117 = vadd.f32 %v116, %v102
    %v118 = vadd.f32 %v117, %v103
    %v119 = vadd.f32 %v118, %v104
    %v120 = vadd.f32 %v119, %v105
    %v121 = vadd.f32 %v120, %v106
    %122 = vadd.xlane.f32.xlu0 %v121
    %v123 = vpop.xlane.xlu0 %122
    %vm124 = vcmask 7168
    %125 = vst.msk [vmem:[%s2] sm:$0xff] %vm124, %v123
    // Predicated region
    $region18: #{tpu_custom_call.1} parent=1 // pred_check
      _
    $region19: #{tpu_custom_call.1} parent=1 // pred_check_branch
      %127 = sbr.rel (0) target = $region21
    $region20: #{tpu_custom_call.1} parent=1 // pred_region
      _
    $region21: #{tpu_custom_call.1} parent=1 // pred_fallthru
      _
    // Predicated region
    $region22: #{tpu_custom_call.1} parent=1 // pred_check
      _
    $region23: #{tpu_custom_call.1} parent=1 // pred_check_branch
      %129 = sbr.rel (0) target = $region25
    $region24: #{tpu_custom_call.1} parent=1 // pred_region
      _
    $region25: #{tpu_custom_call.1} parent=1 // pred_fallthru
      _
    %130 = vsyncpa [#allocation3], 1
    %131 = vsyncpa [#allocation5], 1

</llo_original>
